<compile_context>
chip_gen: v6e
topology: v6e:2x2x1
jax: 0.10.0
libtpu: 0.0.40
codegen_flags: <defaults>
</compile_context>

<pallas_src>
import functools

import jax
import jax.numpy as jnp
import numpy as np
from jax.experimental import pallas as pl
from jax.experimental.pallas import tpu as pltpu


def concat_rows_kernel(a_ref, b_ref, o_ref, *, rows_a):
    # Write each input straight into its (static) output row range.
    # Two direct stores -> pure vst traffic, no concat/XLU work, no temporary.
    o_ref[:rows_a, :] = a_ref[...]
    o_ref[rows_a:, :] = b_ref[...]


def my_model_forward(x, var_a, var_b):
    """Mirrors MyModel.forward: ignores `x`, returns cat((var_a, var_b), 0)."""
    del x  # unused, exactly like the PyTorch forward (never enters the kernel)
    ra, ca = var_a.shape
    rb, cb = var_b.shape
    assert ca == cb, "column counts must match for a dim-0 concat"

    kernel = functools.partial(concat_rows_kernel, rows_a=ra)
    out_shape = jax.ShapeDtypeStruct((ra + rb, ca), var_a.dtype)

    # Full-array blocks (legal even though not (8,128)-divisible, because each
    # block equals the full array shape).  No grid: the whole op moves 48
    # bytes, so a single step minimizes the ~0.35 us/step pipeline overhead.
    return pl.pallas_call(
        kernel,
        out_shape=out_shape,
        in_specs=[
            pl.BlockSpec((ra, ca), lambda: (0, 0),
                         memory_space=pltpu.MemorySpace.VMEM),
            pl.BlockSpec((rb, cb), lambda: (0, 0),
                         memory_space=pltpu.MemorySpace.VMEM),
        ],
        out_specs=pl.BlockSpec((ra + rb, ca), lambda: (0, 0),
                               memory_space=pltpu.MemorySpace.VMEM),
    )(var_a, var_b)


if __name__ == "__main__":
    # Deterministic parameters, exactly the values from the PyTorch __init__.
    var_a = jnp.asarray(
        np.array([[0.1, 0.2, 0.6], [0.3, 0.5, 0.9]]), dtype=jnp.float32
    )
    var_b = jnp.asarray(
        np.array([[0.4, 0.8, 0.6], [0.3, 0.2, 0.0]]), dtype=jnp.float32
    )

    # Example input for interface parity with forward(input); it is ignored by
    # the forward pass and never reaches the kernel.
    key = jax.random.PRNGKey(0)
    x = jax.random.normal(key, (2, 4, 16, 16), dtype=jnp.float32)

    out = my_model_forward(x, var_a, var_b)
    out = jax.block_until_ready(out)

    # Reference check against plain JAX concat (bit-exact: pure data movement).
    ref = jnp.concatenate([var_a, var_b], axis=0)
    np.testing.assert_allclose(np.asarray(out), np.asarray(ref), rtol=0, atol=0)
    assert out.shape == (4, 3)

    print("KERNEL_OK")
</pallas_src>

<mosaic_0001>
module attributes {stable_mosaic.version = 11 : i64} {
  func.func @concat_rows_kernel(%arg0: memref<2x3xf32, #tpu.memory_space<vmem>>, %arg1: memref<2x3xf32, #tpu.memory_space<vmem>>, %arg2: memref<4x3xf32, #tpu.memory_space<vmem>>) attributes {dimension_semantics = [], scalar_prefetch = 0 : i64, scratch_operands = 0 : i64, tpu.core_type = #tpu.core_type<tc>} {
    %c0 = arith.constant 0 : index
    %c0_0 = arith.constant 0 : index
    %0 = vector.load %arg0[%c0, %c0_0] : memref<2x3xf32, #tpu.memory_space<vmem>>, vector<2x3xf32>
    %c0_1 = arith.constant 0 : index
    %c0_2 = arith.constant 0 : index
    %1 = vector.load %arg2[%c0_1, %c0_2] : memref<4x3xf32, #tpu.memory_space<vmem>>, vector<2x3xf32>
    tpu.vector_store %arg2[%c0_1, %c0_2], %0 {strides = array<i32>} : memref<4x3xf32, #tpu.memory_space<vmem>>, vector<2x3xf32>,
    %c0_3 = arith.constant 0 : index
    %c0_4 = arith.constant 0 : index
    %2 = vector.load %arg1[%c0_3, %c0_4] : memref<2x3xf32, #tpu.memory_space<vmem>>, vector<2x3xf32>
    %c2 = arith.constant 2 : index
    %c0_5 = arith.constant 0 : index
    %3 = vector.load %arg2[%c2, %c0_5] : memref<4x3xf32, #tpu.memory_space<vmem>>, vector<2x3xf32>
    tpu.vector_store %arg2[%c2, %c0_5], %2 {strides = array<i32>} : memref<4x3xf32, #tpu.memory_space<vmem>>, vector<2x3xf32>,
    return
  }
}

</mosaic_0001>

<llo_original>
// kernel: tpu_custom_call.1
$region0: #{tpu_custom_call.1}
  #allocation0 [shape = 'u32[]', space=smem, size = 0x4, offset = 0x4, fixed_abs, tag = 'smem constant byte address 0x4 - core index']
  #allocation1 [shape = 'u32[144,128]{1,0:T(1,128)}', space=vmem, size = 0x12000, scoped, tag = 'internal scratch']
  %s0 = inlined_call_operand.hbm [shape: f32[2,3], index: 0, kind: input, shape index: {}]
  %s1 = inlined_call_operand.hbm [shape: f32[2,3], index: 1, kind: input, shape index: {}]
  %s2 = inlined_call_operand.hbm [shape: f32[4,3], index: 2, kind: output, shape index: {}]
  %s3 = sld [smem:[#allocation0]]
  $region26: #{tpu_custom_call.1} parent=0
    _
  %s5 = ssub.s32 1, %s3
  %s6 = scalar_select 0, %s5, %s3
  $region1: #{tpu_custom_call.1} parent=0
    #allocation2 [shape = 'u8[1024]{0}', space=vmem, size = 0x400, scoped, tag = 'input window, operand 0, single buffered']
    #allocation3 [shape = 's32[1]{0}', space=sflag, size = 0x4, scoped, tag = 'scoped memory for tpu_custom_call.1']
    #allocation4 [shape = 's32[1]{0}', space=sflag, size = 0x4, scoped, tag = 'scoped memory for tpu_custom_call.1']
    #allocation5 [shape = 'u8[1024]{0}', space=vmem, size = 0x400, scoped, tag = 'input window, operand 1, single buffered']
    #allocation6 [shape = 's32[1]{0}', space=sflag, size = 0x4, scoped, tag = 'scoped memory for tpu_custom_call.1']
    #allocation7 [shape = 'u8[2048]{0}', space=vmem, size = 0x800, scoped, tag = 'output window, operand 0, single buffered']
    %7 = vsyncpa [#allocation3], 0
    %8 = vsyncpa [#allocation6], 0
    %9 = vsyncpa [#allocation4], 0
    // Predicated region
    $region2: #{tpu_custom_call.1} parent=1 // pred_check
      _
    $region3: #{tpu_custom_call.1} parent=1 // pred_check_branch
      %11 = sbr.rel (0) target = $region5
    $region4: #{tpu_custom_call.1} parent=1 // pred_region
      %s13 = ssub.s32 32, 32
      %14 = vsyncadd [#allocation3], %s13
      %s16 = sshll.u32 [#allocation2], 4
      %s17 = int_to_ptr.vmem [resolvable:$true] %s16
      %19 = dma.hbm_to_vmem [thread:$0]  %s0, 32, %s17, [#allocation3]
    $region5: #{tpu_custom_call.1} parent=1 // pred_fallthru
      _
    // Predicated region
    $region6: #{tpu_custom_call.1} parent=1 // pred_check
      _
    $region7: #{tpu_custom_call.1} parent=1 // pred_check_branch
      %21 = sbr.rel (0) target = $region9
    $region8: #{tpu_custom_call.1} parent=1 // pred_region
      %s23 = ssub.s32 32, 32
      %24 = vsyncadd [#allocation6], %s23
      %s26 = sshll.u32 [#allocation5], 4
      %s27 = int_to_ptr.vmem [resolvable:$true] %s26
      %29 = dma.hbm_to_vmem [thread:$0]  %s1, 32, %s27, [#allocation6]
    $region9: #{tpu_custom_call.1} parent=1 // pred_fallthru
      _
    // Predicated region
    $region10: #{tpu_custom_call.1} parent=1 // pred_check
      _
    $region11: #{tpu_custom_call.1} parent=1 // pred_check_branch
      %31 = sbr.rel (0) target = $region13
    $region12: #{tpu_custom_call.1} parent=1 // pred_region
      %32 = dma.done [#allocation3], 32
    $region13: #{tpu_custom_call.1} parent=1 // pred_fallthru
      _
    // Predicated region
    $region14: #{tpu_custom_call.1} parent=1 // pred_check
      _
    $region15: #{tpu_custom_call.1} parent=1 // pred_check_branch
      %34 = sbr.rel (0) target = $region17
    $region16: #{tpu_custom_call.1} parent=1 // pred_region
      %35 = dma.done [#allocation6], 32
    $region17: #{tpu_custom_call.1} parent=1 // pred_fallthru
      _
    %v36 = vld [vmem:[#allocation2] sm:$0x3]
    %vm37 = vcmask 17408
    %38 = vst.msk [vmem:[#allocation7] sm:$0x3] %vm37, %v36
    %v39 = vld [vmem:[#allocation5] sm:$0x3]
    %40 = vst.msk [vmem:[#allocation7 + $0x2] sm:$0x3] %vm37, %v39
    // Predicated region
    $region18: #{tpu_custom_call.1} parent=1 // pred_check
      _
    $region19: #{tpu_custom_call.1} parent=1 // pred_check_branch
      %42 = sbr.rel (0) target = $region21
    $region20: #{tpu_custom_call.1} parent=1 // pred_region
      %s44 = ssub.s32 64, 64
      %45 = vsyncadd [#allocation4], %s44
      %s47 = sshll.u32 [#allocation7], 4
      %s48 = int_to_ptr.vmem [resolvable:$true] %s47
      %50 = dma.vmem_to_hbm [thread:$0]  %s48, 64, %s2, [#allocation4]
    $region21: #{tpu_custom_call.1} parent=1 // pred_fallthru
      _
    // Predicated region
    $region22: #{tpu_custom_call.1} parent=1 // pred_check
      _
    $region23: #{tpu_custom_call.1} parent=1 // pred_check_branch
      %52 = sbr.rel (0) target = $region25
    $region24: #{tpu_custom_call.1} parent=1 // pred_region
      %53 = dma.done [#allocation4], 64
    $region25: #{tpu_custom_call.1} parent=1 // pred_fallthru
      _
    %54 = vsyncpa [#allocation3], 1
    %55 = vsyncpa [#allocation6], 1
    %56 = vsyncpa [#allocation4], 1

</llo_original>
